<compile_context>
chip_gen: v7x
topology: tpu7x:2x2x1
jax: 0.10.0
libtpu: 0.0.40
codegen_flags: <defaults>
</compile_context>

<pallas_src>
import functools

import jax
import jax.numpy as jnp
import numpy as np
from jax import lax
from jax.experimental import pallas as pl
from jax.experimental.pallas import tpu as pltpu


def _channel_attention_kernel(x_ref, w1_ref, w2_ref, o_ref, *, chunk):
    # x_ref : (C, HW)      -- one image; channels on sublanes, spatial on lanes
    # w1_ref: (Cr, C)  f32 -- fc1 weight (PyTorch layout, applied in column form)
    # w2_ref: (C, Cr)  f32 -- fc2 weight
    # o_ref : (C, HW)      -- same dtype as x
    c, hw = x_ref.shape
    n_full = hw // chunk                 # static
    rem = hw - n_full * chunk            # static
    do_unroll = 0 < n_full <= 8          # short fixed loops: give LLO visibility

    # ---- pass 1: pooled reductions over the lane (spatial) axis --------------
    # Wide (C, chunk) VPU accumulators inside the loop; one XLU reduce after.
    if n_full > 0:
        def reduce_body(k, carry):
            s_vec, m_vec = carry
            off = pl.multiple_of(k * chunk, 128)
            xc = x_ref[:, pl.ds(off, chunk)].astype(jnp.float32)
            return s_vec + xc, jnp.maximum(m_vec, xc)

        s_vec, m_vec = lax.fori_loop(
            0, n_full, reduce_body,
            (jnp.zeros((c, chunk), jnp.float32),
             jnp.full((c, chunk), -jnp.inf, jnp.float32)),
            unroll=do_unroll)
        s = jnp.sum(s_vec, axis=-1, keepdims=True)
        m = jnp.max(m_vec, axis=-1, keepdims=True)
    else:
        s = jnp.zeros((c, 1), jnp.float32)
        m = jnp.full((c, 1), -jnp.inf, jnp.float32)

    if rem > 0:
        # Statically peeled tail: exact extent, no padded lanes, no masking.
        xt = x_ref[:, n_full * chunk:hw].astype(jnp.float32)    # (C, rem)
        s = s + jnp.sum(xt, axis=-1, keepdims=True)
        m = jnp.maximum(m, jnp.max(xt, axis=-1, keepdims=True))

    avg = s * (1.0 / hw)                                        # (C, 1) true average

    # ---- shared MLP, fused over {avg, max} (column form, one MXU chain) ------
    # FLOPs negligible; this is only a small per-step latency bubble.
    v = jnp.concatenate([avg, m], axis=1)                       # (C, 2)
    h = jnp.dot(w1_ref[...], v, preferred_element_type=jnp.float32)   # (Cr, 2)
    h = jnp.maximum(h, 0.0)                                     # ReLU
    z = jnp.dot(w2_ref[...], h, preferred_element_type=jnp.float32)   # (C, 2)
    y = jax.nn.sigmoid(z[:, 0:1] + z[:, 1:2]).astype(o_ref.dtype)     # (C, 1) gate

    # ---- pass 2: per-channel scaling (gate broadcast hoisted out of loop) ----
    if n_full > 0:
        yb = jnp.broadcast_to(y, (c, chunk))                    # hoisted once

        def scale_body(k, carry):
            off = pl.multiple_of(k * chunk, 128)
            o_ref[:, pl.ds(off, chunk)] = x_ref[:, pl.ds(off, chunk)] * yb
            return carry

        lax.fori_loop(0, n_full, scale_body, 0, unroll=do_unroll)

    if rem > 0:
        o_ref[:, n_full * chunk:hw] = (
            x_ref[:, n_full * chunk:hw] * jnp.broadcast_to(y, (c, rem)))


def _vmem_capacity_bytes():
    """Per-generation VMEM capacity (v5e/v6e: 128 MiB, v7x: 64 MiB per core)."""
    try:
        return int(pltpu.get_tpu_info().vmem_capacity_bytes)
    except Exception:
        return 64 << 20   # conservative fallback (v7x)


def channel_attention(x_nchw, w_fc1, w_fc2, *, max_chunk=1024):
    """x_nchw: (B, C, H, W); w_fc1: (C//r, C); w_fc2: (C, C//r). Bias-free."""
    b, c, h, w = x_nchw.shape
    cr = w_fc1.shape[0]
    hw = h * w

    # Layout-only reshape; no padding, no post-slice -> minimal HBM traffic.
    x3 = x_nchw.reshape(b, c, hw)
    w_fc1 = w_fc1.astype(jnp.float32)
    w_fc2 = w_fc2.astype(jnp.float32)

    # Main chunk: largest 128-multiple <= min(max_chunk, HW); the remainder is a
    # statically peeled tail inside the kernel.
    chunk = max(128, min((max_chunk // 128) * 128, (hw // 128) * 128))

    kernel = functools.partial(_channel_attention_kernel, chunk=chunk)

    itemsize = x3.dtype.itemsize
    # Honest mem-bound cost hint: read x once + write out once (+ tiny MLP).
    cost = pl.CostEstimate(
        flops=b * (2 * c * hw + 8 * c * cr),
        transcendentals=b * c,
        bytes_accessed=2 * b * c * hw * itemsize + 2 * c * cr * 4,
    )

    # VMEM budget: 2x input block + 2x output block (double buffering) + resident
    # weights + headroom, capped per generation from the hardware query.
    block_bytes = c * hw * itemsize
    weight_bytes = 2 * c * cr * 4
    vmem_cap = int(_vmem_capacity_bytes() * 0.85)   # headroom for compiler scratch
    needed = 4 * block_bytes + weight_bytes + (1 << 20)

    out_spec_kwargs = {}
    if needed > vmem_cap:
        # Keep the input prefetch alive; single-buffer the output instead.
        # TODO(synk): manual chunked-HBM path (pl.ANY + make_async_copy) when
        # even 3x-buffered blocks exceed VMEM.
        out_spec_kwargs["pipeline_mode"] = pl.Buffered(1)
        needed = 3 * block_bytes + weight_bytes + (1 << 20)
    vmem_limit = int(max(32 << 20, min(needed, vmem_cap)))

    out3 = pl.pallas_call(
        kernel,
        out_shape=jax.ShapeDtypeStruct((b, c, hw), x3.dtype),
        grid=(b,),
        in_specs=[
            pl.BlockSpec((None, c, hw), lambda i: (i, 0, 0)),   # x: per-batch tile
            pl.BlockSpec((cr, c), lambda i: (0, 0)),            # fc1 weight (resident)
            pl.BlockSpec((c, cr), lambda i: (0, 0)),            # fc2 weight (resident)
        ],
        out_specs=pl.BlockSpec((None, c, hw), lambda i: (i, 0, 0), **out_spec_kwargs),
        compiler_params=pltpu.CompilerParams(
            dimension_semantics=("parallel",),
            vmem_limit_bytes=vmem_limit,
        ),
        cost_estimate=cost,
    )(x3, w_fc1, w_fc2)

    return out3.reshape(b, c, h, w)


def channel_attention_ref(x, w_fc1, w_fc2):
    """Pure-JAX reference mirroring the PyTorch forward."""
    avg = jnp.mean(x, axis=(2, 3))                              # (B, C)
    mx = jnp.max(x, axis=(2, 3))                                # (B, C)

    def mlp(v):
        return jnp.maximum(v @ w_fc1.T, 0.0) @ w_fc2.T

    y = jax.nn.sigmoid(mlp(avg) + mlp(mx))
    return x * y[:, :, None, None]


if __name__ == "__main__":
    B, C, H, W = 2, 64, 14, 14          # HW=196 -> one 128-lane chunk + 68-lane tail
    R = 16
    Cr = C // R

    key = jax.random.PRNGKey(0)
    kx, k1, k2 = jax.random.split(key, 3)

    x = jax.random.normal(kx, (B, C, H, W), dtype=jnp.float32)
    # deterministic synthetic bias-free Linear weights
    w_fc1 = jax.random.normal(k1, (Cr, C), dtype=jnp.float32) * (1.0 / np.sqrt(C))
    w_fc2 = jax.random.normal(k2, (C, Cr), dtype=jnp.float32) * (1.0 / np.sqrt(Cr))

    out = channel_attention(x, w_fc1, w_fc2)
    out = jax.block_until_ready(out)

    ref = channel_attention_ref(x, w_fc1, w_fc2)
    np.testing.assert_allclose(np.asarray(out), np.asarray(ref), rtol=1e-5, atol=1e-5)

    print("KERNEL_OK")
</pallas_src>

<mosaic_0001>
module attributes {stable_mosaic.version = 11 : i64} {
  func.func @_channel_attention_kernel(%arg0: i32, %arg1: memref<1x64x196xf32, #tpu.memory_space<vmem>>, %arg2: memref<4x64xf32, #tpu.memory_space<vmem>>, %arg3: memref<64x4xf32, #tpu.memory_space<vmem>>, %arg4: memref<1x64x196xf32, #tpu.memory_space<vmem>>) attributes {dimension_semantics = [#tpu.dimension_semantics<parallel>], iteration_bounds = array<i64: 2>, scalar_prefetch = 0 : i64, scratch_operands = 0 : i64, tpu.core_type = #tpu.core_type<tc>, window_params = [{transform_indices = @transform_0, window_bounds = array<i64: 1, 64, 196>}, {pipeline_mode = #tpu.pipeline_mode<synchronous>, transform_indices = @transform_1, window_bounds = array<i64: 4, 64>}, {pipeline_mode = #tpu.pipeline_mode<synchronous>, transform_indices = @transform_2, window_bounds = array<i64: 64, 4>}, {transform_indices = @transform_3, window_bounds = array<i64: 1, 64, 196>}]} {
    %cst = arith.constant 0.000000e+00 : f32
    %0 = vector.broadcast %cst : f32 to vector<64x128xf32>
    %cst_0 = arith.constant 0xFF800000 : f32
    %1 = vector.broadcast %cst_0 : f32 to vector<64x128xf32>
    %c0_i32 = arith.constant 0 : i32
    %c128_i32 = arith.constant 128 : i32
    %2 = arith.muli %c0_i32, %c128_i32 : i32
    %3 = tpu.assume_multiple %2, 128 : i32
    %c0 = arith.constant 0 : index
    %c0_1 = arith.constant 0 : index
    %4 = arith.index_cast %3 : i32 to index
    %5 = vector.load %arg1[%c0, %c0_1, %4] : memref<1x64x196xf32, #tpu.memory_space<vmem>>, vector<1x64x128xf32>
    %6 = vector.shape_cast %5 : vector<1x64x128xf32> to vector<64x128xf32>
    %7 = arith.addf %0, %6 : vector<64x128xf32>
    %8 = arith.maximumf %1, %6 : vector<64x128xf32>
    %c1_i32 = arith.constant 1 : i32
    %cst_2 = arith.constant dense<0.000000e+00> : vector<64xf32>
    %9 = vector.multi_reduction <add>, %7, %cst_2 [1] : vector<64x128xf32> to vector<64xf32>
    %10 = vector.shape_cast %9 : vector<64xf32> to vector<64x1xf32>
    %cst_3 = arith.constant dense<0xFF800000> : vector<64xf32>
    %11 = vector.multi_reduction <maximumf>, %8, %cst_3 [1] : vector<64x128xf32> to vector<64xf32>
    %12 = vector.shape_cast %11 : vector<64xf32> to vector<64x1xf32>
    %c0_4 = arith.constant 0 : index
    %c0_5 = arith.constant 0 : index
    %c128 = arith.constant 128 : index
    %13 = vector.load %arg1[%c0_4, %c0_5, %c128] : memref<1x64x196xf32, #tpu.memory_space<vmem>>, vector<1x64x68xf32>
    %14 = vector.shape_cast %13 : vector<1x64x68xf32> to vector<64x68xf32>
    %cst_6 = arith.constant dense<0.000000e+00> : vector<64xf32>
    %15 = vector.multi_reduction <add>, %14, %cst_6 [1] : vector<64x68xf32> to vector<64xf32>
    %16 = vector.shape_cast %15 : vector<64xf32> to vector<64x1xf32>
    %17 = arith.addf %10, %16 : vector<64x1xf32>
    %cst_7 = arith.constant dense<0xFF800000> : vector<64xf32>
    %18 = vector.multi_reduction <maximumf>, %14, %cst_7 [1] : vector<64x68xf32> to vector<64xf32>
    %19 = vector.shape_cast %18 : vector<64xf32> to vector<64x1xf32>
    %20 = arith.maximumf %12, %19 : vector<64x1xf32>
    %cst_8 = arith.constant 0.00510204071 : f32
    %21 = vector.broadcast %cst_8 : f32 to vector<64x1xf32>
    %22 = arith.mulf %17, %21 : vector<64x1xf32>
    %23 = tpu.concatenate %22, %20 in 1 : vector<64x1xf32>, vector<64x1xf32> -> vector<64x2xf32>
    %c0_9 = arith.constant 0 : index
    %c0_10 = arith.constant 0 : index
    %24 = vector.load %arg2[%c0_9, %c0_10] : memref<4x64xf32, #tpu.memory_space<vmem>>, vector<4x64xf32>
    %cst_11 = arith.constant dense<0.000000e+00> : vector<4x2xf32>
    %25 = tpu.matmul %24, %23, %cst_11 {dimension_numbers = #tpu.dot_dimension_numbers<[1], [0], [0], [1], [0, 0, 1, 1], [], []>} : vector<4x64xf32>, vector<64x2xf32>, vector<4x2xf32> -> vector<4x2xf32>
    %cst_12 = arith.constant 0.000000e+00 : f32
    %26 = vector.broadcast %cst_12 : f32 to vector<4x2xf32>
    %27 = arith.maximumf %25, %26 : vector<4x2xf32>
    %c0_13 = arith.constant 0 : index
    %c0_14 = arith.constant 0 : index
    %28 = vector.load %arg3[%c0_13, %c0_14] : memref<64x4xf32, #tpu.memory_space<vmem>>, vector<64x4xf32>
    %cst_15 = arith.constant dense<0.000000e+00> : vector<64x2xf32>
    %29 = tpu.matmul %28, %27, %cst_15 {dimension_numbers = #tpu.dot_dimension_numbers<[1], [0], [0], [1], [0, 0, 1, 1], [], []>} : vector<64x4xf32>, vector<4x2xf32>, vector<64x2xf32> -> vector<64x2xf32>
    %30 = vector.extract_strided_slice %29 {offsets = [0, 0], sizes = [64, 1], strides = [1, 1]} : vector<64x2xf32> to vector<64x1xf32>
    %31 = vector.extract_strided_slice %29 {offsets = [0, 1], sizes = [64, 1], strides = [1, 1]} : vector<64x2xf32> to vector<64x1xf32>
    %32 = arith.addf %30, %31 : vector<64x1xf32>
    %33 = arith.negf %32 : vector<64x1xf32>
    %34 = math.exp %33 : vector<64x1xf32>
    %cst_16 = arith.constant 1.000000e+00 : f32
    %35 = vector.broadcast %cst_16 : f32 to vector<64x1xf32>
    %36 = arith.addf %35, %34 : vector<64x1xf32>
    %37 = arith.divf %35, %36 : vector<64x1xf32>
    %38 = vector.shape_cast %37 : vector<64x1xf32> to vector<64x1xf32>
    %39 = vector.broadcast %38 : vector<64x1xf32> to vector<64x128xf32>
    %c0_i32_17 = arith.constant 0 : i32
    %c128_i32_18 = arith.constant 128 : i32
    %40 = arith.muli %c0_i32_17, %c128_i32_18 : i32
    %41 = tpu.assume_multiple %40, 128 : i32
    %c0_19 = arith.constant 0 : index
    %c0_20 = arith.constant 0 : index
    %42 = arith.index_cast %41 : i32 to index
    %43 = vector.load %arg1[%c0_19, %c0_20, %42] : memref<1x64x196xf32, #tpu.memory_space<vmem>>, vector<1x64x128xf32>
    %44 = vector.shape_cast %43 : vector<1x64x128xf32> to vector<64x128xf32>
    %45 = arith.mulf %44, %39 : vector<64x128xf32>
    %c0_21 = arith.constant 0 : index
    %c0_22 = arith.constant 0 : index
    %46 = arith.index_cast %41 : i32 to index
    %47 = vector.load %arg4[%c0_21, %c0_22, %46] : memref<1x64x196xf32, #tpu.memory_space<vmem>>, vector<1x64x128xf32>
    %48 = vector.shape_cast %47 : vector<1x64x128xf32> to vector<64x128xf32>
    %49 = vector.shape_cast %45 : vector<64x128xf32> to vector<1x64x128xf32>
    tpu.vector_store %arg4[%c0_21, %c0_22, %46], %49 {strides = array<i32>} : memref<1x64x196xf32, #tpu.memory_space<vmem>>, vector<1x64x128xf32>,
    %c1_i32_23 = arith.constant 1 : i32
    %c0_24 = arith.constant 0 : index
    %c0_25 = arith.constant 0 : index
    %c128_26 = arith.constant 128 : index
    %50 = vector.load %arg1[%c0_24, %c0_25, %c128_26] : memref<1x64x196xf32, #tpu.memory_space<vmem>>, vector<1x64x68xf32>
    %51 = vector.shape_cast %50 : vector<1x64x68xf32> to vector<64x68xf32>
    %52 = vector.shape_cast %37 : vector<64x1xf32> to vector<64x1xf32>
    %53 = vector.broadcast %52 : vector<64x1xf32> to vector<64x68xf32>
    %54 = arith.mulf %51, %53 : vector<64x68xf32>
    %c0_27 = arith.constant 0 : index
    %c0_28 = arith.constant 0 : index
    %c128_29 = arith.constant 128 : index
    %55 = vector.load %arg4[%c0_27, %c0_28, %c128_29] : memref<1x64x196xf32, #tpu.memory_space<vmem>>, vector<1x64x68xf32>
    %56 = vector.shape_cast %55 : vector<1x64x68xf32> to vector<64x68xf32>
    %57 = vector.shape_cast %54 : vector<64x68xf32> to vector<1x64x68xf32>
    tpu.vector_store %arg4[%c0_27, %c0_28, %c128_29], %57 {strides = array<i32>} : memref<1x64x196xf32, #tpu.memory_space<vmem>>, vector<1x64x68xf32>,
    return
  }
  func.func @transform_0(%arg0: i32) -> (i32, i32, i32) {
    %c0_i32 = arith.constant 0 : i32
    %c0_i32_0 = arith.constant 0 : i32
    %c0_i32_1 = arith.constant 0 : i32
    return %arg0, %c0_i32, %c0_i32_0 : i32, i32, i32
  }
  func.func @transform_1(%arg0: i32) -> (i32, i32) {
    %c0_i32 = arith.constant 0 : i32
    %c0_i32_0 = arith.constant 0 : i32
    %c0_i32_1 = arith.constant 0 : i32
    return %c0_i32, %c0_i32_0 : i32, i32
  }
  func.func @transform_2(%arg0: i32) -> (i32, i32) {
    %c0_i32 = arith.constant 0 : i32
    %c0_i32_0 = arith.constant 0 : i32
    %c0_i32_1 = arith.constant 0 : i32
    return %c0_i32, %c0_i32_0 : i32, i32
  }
  func.func @transform_3(%arg0: i32) -> (i32, i32, i32) {
    %c0_i32 = arith.constant 0 : i32
    %c0_i32_0 = arith.constant 0 : i32
    %c0_i32_1 = arith.constant 0 : i32
    return %arg0, %c0_i32, %c0_i32_0 : i32, i32, i32
  }
}

</mosaic_0001>

<llo_original>
// kernel: tpu_custom_call.1
$region0: #{tpu_custom_call.1}
  #allocation0 [shape = 'u32[]', space=smem, size = 0x4, offset = 0x4, fixed_abs, tag = 'smem constant byte address 0x4 - core index']
  #allocation1 [shape = 'u32[144,128]{1,0:T(1,128)}', space=vmem, size = 0x12000, scoped, tag = 'internal scratch']
  %s0 = inlined_call_operand.hbm [shape: f32[2,64,196], index: 0, kind: input, shape index: {}]
  %s1 = inlined_call_operand.vmem [shape: f32[4,64], index: 1, kind: input, shape index: {}]
  %s2 = inlined_call_operand.vmem [shape: f32[64,4], index: 2, kind: input, shape index: {}]
  %s3 = inlined_call_operand.hbm [shape: f32[2,64,196], index: 3, kind: output, shape index: {}]
  %s4 = sld [smem:[#allocation0]]
  $region49: #{tpu_custom_call.1} parent=0
    _
  %s6 = ssub.s32 1, %s4
  %s7 = scalar_select 0, %s6, %s4
  $region1: #{tpu_custom_call.1} parent=0
    #allocation2 [shape = 'u8[131072]{0}', space=vmem, size = 0x20000, scoped, tag = 'input window, operand 0']
    #allocation3 [shape = 's32[2]{0}', space=sflag, size = 0x8, scoped, tag = 'scoped memory for tpu_custom_call.1']
    #allocation4 [shape = 's32[2]{0}', space=sflag, size = 0x8, scoped, tag = 'scoped memory for tpu_custom_call.1']
    #allocation5 [shape = 'u8[131072]{0}', space=vmem, size = 0x20000, scoped, tag = 'output window, operand 0']
    %8 = vsyncpa [#allocation3], 0
    %s9 = scalar_lea.sflag [#allocation3], 1
    %10 = vsyncpa %s9, 0
    %11 = vsyncpa [#allocation4], 0
    %s12 = scalar_lea.sflag [#allocation4], 1
    %13 = vsyncpa %s12, 0
    loop: start=0, step=1, limit=4
    $region2: #{tpu_custom_call.1} parent=1 // loop_pre_header
      _
    $region3: #{tpu_custom_call.1} parent=1 // loop_header
      %s15 = sphi 0, %s19
      %p16 = scmp.ge.s32.totalorder %s15, 4
      %s25 = sphi 0, %s27
      %s28 = sphi 0, %s25
      %s29 = sphi 0, %s28
      %s45 = sphi 0, %s29
      %s49 = sphi 0, %s49
      %s51 = sphi 0, %s49
      %s52 = sphi 0, %s51
      %s66 = sphi 0, %s52
      %s70 = sphi 0, %s70
      %s72 = sphi 0, %s70
      %s73 = sphi 0, %s72
      %s87 = sphi 0, %s73
      %s93 = sphi 0, %s95
      %s96 = sphi 0, %s93
      %s97 = sphi 0, %s96
      %s113 = sphi 0, %s97
    $region4: #{tpu_custom_call.1} parent=1 // loop_header_branch
      %18 = sbr.rel (%p16) target = $region8
    $region5: #{tpu_custom_call.1} parent=1 // loop_body
      %s20 = ssub.s32 %s15, 1
      %s21 = ssub.s32 %s15, 2
      %s22 = sadd.s32 %s15, 1
      %s23 = ssub.s32 %s15, %s22
      %p24 = scmp.eq.s32.totalorder %s23, 0
      %s26 = sadd.s32 %s25, 1
      %s27 = scalar_select %p24, %s25, %s26
      %p30 = pneg %p24
      %p31 = scmp.eq.s32.totalorder %s15, 1
      %p32 = por %p30, %p31
      %p33 = scmp.ne.s32.totalorder %s25, %s28
      %p34 = scmp.eq.s32.totalorder %s15, 0
      %p35 = por %p33, %p34
      %p36 = scmp.ne.s32.totalorder %s25, %s28
      %p37 = scmp.eq.s32.totalorder %s20, 1
      %p38 = por %p36, %p37
      %p39 = scmp.ne.s32.totalorder %s28, %s29
      %p40 = scmp.eq.s32.totalorder %s20, 0
      %p41 = por %p39, %p40
      %p42 = scmp.ne.s32.totalorder %s28, %s29
      %p43 = scmp.eq.s32.totalorder %s21, 1
      %p44 = por %p42, %p43
      %p46 = scmp.ne.s32.totalorder %s29, %s45
      %p47 = scmp.eq.s32.totalorder %s21, 0
      %p48 = por %p46, %p47
      %s50 = sadd.s32 %s49, 1
      %p53 = scmp.eq.s32.totalorder %s15, 1
      %p54 = scmp.ne.s32.totalorder %s49, %s51
      %p55 = scmp.eq.s32.totalorder %s15, 0
      %p56 = por %p54, %p55
      %p57 = scmp.ne.s32.totalorder %s49, %s51
      %p58 = scmp.eq.s32.totalorder %s20, 1
      %p59 = por %p57, %p58
      %p60 = scmp.ne.s32.totalorder %s51, %s52
      %p61 = scmp.eq.s32.totalorder %s20, 0
      %p62 = por %p60, %p61
      %p63 = scmp.ne.s32.totalorder %s51, %s52
      %p64 = scmp.eq.s32.totalorder %s21, 1
      %p65 = por %p63, %p64
      %p67 = scmp.ne.s32.totalorder %s52, %s66
      %p68 = scmp.eq.s32.totalorder %s21, 0
      %p69 = por %p67, %p68
      %s71 = sadd.s32 %s70, 1
      %p74 = scmp.eq.s32.totalorder %s15, 1
      %p75 = scmp.ne.s32.totalorder %s70, %s72
      %p76 = scmp.eq.s32.totalorder %s15, 0
      %p77 = por %p75, %p76
      %p78 = scmp.ne.s32.totalorder %s70, %s72
      %p79 = scmp.eq.s32.totalorder %s20, 1
      %p80 = por %p78, %p79
      %p81 = scmp.ne.s32.totalorder %s72, %s73
      %p82 = scmp.eq.s32.totalorder %s20, 0
      %p83 = por %p81, %p82
      %p84 = scmp.ne.s32.totalorder %s72, %s73
      %p85 = scmp.eq.s32.totalorder %s21, 1
      %p86 = por %p84, %p85
      %p88 = scmp.ne.s32.totalorder %s73, %s87
      %p89 = scmp.eq.s32.totalorder %s21, 0
      %p90 = por %p88, %p89
      %s91 = ssub.s32 %s15, %s22
      %p92 = scmp.eq.s32.totalorder %s91, 0
      %s94 = sadd.s32 %s93, 1
      %s95 = scalar_select %p92, %s93, %s94
      %p98 = pneg %p92
      %p99 = scmp.eq.s32.totalorder %s15, 1
      %p100 = por %p98, %p99
      %p101 = scmp.ne.s32.totalorder %s93, %s96
      %p102 = scmp.eq.s32.totalorder %s15, 0
      %p103 = por %p101, %p102
      %p104 = scmp.ne.s32.totalorder %s93, %s96
      %p105 = scmp.eq.s32.totalorder %s20, 1
      %p106 = por %p104, %p105
      %p107 = scmp.ne.s32.totalorder %s96, %s97
      %p108 = scmp.eq.s32.totalorder %s20, 0
      %p109 = por %p107, %p108
      %p110 = scmp.ne.s32.totalorder %s96, %s97
      %p111 = scmp.eq.s32.totalorder %s21, 1
      %p112 = por %p110, %p111
      %p114 = scmp.ne.s32.totalorder %s97, %s113
      %p115 = scmp.eq.s32.totalorder %s21, 0
      %p116 = por %p114, %p115
      %p117 = scmp.le.s32.totalorder 1, %s15
      %p118 = scmp.lt.s32.totalorder %s15, 3
      %p119 = pnand %p117, %p118
      %p120 = pneg %p119
      // Predicated region
      $region9: #{tpu_custom_call.1} parent=5 // pred_check
        _
      $region10: #{tpu_custom_call.1} parent=5 // pred_check_branch
        %122 = sbr.rel (%p119) target = $region12
      $region11: #{tpu_custom_call.1} parent=5 // pred_region
        %s123 = ssub.s32 %s15, 1
        // Predicated region
        $region13: #{tpu_custom_call.1} parent=11 // pred_check
          %p124 = pneg %p62
        $region14: #{tpu_custom_call.1} parent=11 // pred_check_branch
          %126 = sbr.rel (%p124) target = $region16
        $region15: #{tpu_custom_call.1} parent=11 // pred_region
          _
        $region16: #{tpu_custom_call.1} parent=11 // pred_fallthru
          _
        // Predicated region
        $region17: #{tpu_custom_call.1} parent=11 // pred_check
          %p127 = pneg %p83
        $region18: #{tpu_custom_call.1} parent=11 // pred_check_branch
          %129 = sbr.rel (%p127) target = $region20
        $region19: #{tpu_custom_call.1} parent=11 // pred_region
          _
        $region20: #{tpu_custom_call.1} parent=11 // pred_fallthru
          _
      $region12: #{tpu_custom_call.1} parent=5 // pred_fallthru
        _
      %p130 = scmp.lt.s32.totalorder %s15, 2
      // Predicated region
      $region21: #{tpu_custom_call.1} parent=5 // pred_check
        %p131 = pneg %p130
      $region22: #{tpu_custom_call.1} parent=5 // pred_check_branch
        %133 = sbr.rel (%p131) target = $region24
      $region23: #{tpu_custom_call.1} parent=5 // pred_region
        // Predicated region
        $region25: #{tpu_custom_call.1} parent=23 // pred_check
          %p134 = pneg %p35
        $region26: #{tpu_custom_call.1} parent=23 // pred_check_branch
          %136 = sbr.rel (%p134) target = $region28
        $region27: #{tpu_custom_call.1} parent=23 // pred_region
          %s137 = sand.u32 %s25, 1
          %s138 = scalar_lea.sflag [#allocation3], %s137
          %s139 = sand.u32 %s25, 1
          %s140 = smul.addr %s139, 128
          %s141 = scalar_lea.vmem [#allocation2], %s140
          %s143 = ssub.s32 2048, 2048
          %144 = vsyncadd %s138, %s143
          %s145 = smul.addr %s15, 16
          %s146 = smul.addr %s145, 128
          %s147 = scalar_lea.hbm %s0, %s146
          %s148 = sshll.u32 %s141, 4
          %s149 = int_to_ptr.vmem [resolvable:$true] %s148
          %154 = dma.hbm_to_vmem [thread:$0]  %s147, 2048, %s149, %s138, 256, 256, 16
        $region28: #{tpu_custom_call.1} parent=23 // pred_fallthru
          _
      $region24: #{tpu_custom_call.1} parent=5 // pred_fallthru
        _
      %p155 = scmp.le.s32.totalorder 1, %s15
      %p156 = scmp.lt.s32.totalorder %s15, 3
      %p157 = pnand %p155, %p156
      %p158 = pneg %p157
      // Predicated region
      $region29: #{tpu_custom_call.1} parent=5 // pred_check
        _
      $region30: #{tpu_custom_call.1} parent=5 // pred_check_branch
        %160 = sbr.rel (%p157) target = $region32
      $region31: #{tpu_custom_call.1} parent=5 // pred_region
        %s161 = ssub.s32 %s15, 1
        %s162 = sand.u32 %s28, 1
        %s163 = scalar_lea.sflag [#allocation3], %s162
        %s164 = sand.u32 %s28, 1
        %s165 = smul.addr %s164, 128
        %s166 = scalar_lea.vmem [#allocation2], %s165
        // Predicated region
        $region33: #{tpu_custom_call.1} parent=31 // pred_check
          %p167 = pneg %p41
        $region34: #{tpu_custom_call.1} parent=31 // pred_check_branch
          %169 = sbr.rel (%p167) target = $region36
        $region35: #{tpu_custom_call.1} parent=31 // pred_region
          %170 = dma.done %s163, 2048
        $region36: #{tpu_custom_call.1} parent=31 // pred_fallthru
          _
        %s171 = sand.u32 %s28, 1
        %s172 = scalar_lea.sflag [#allocation3], %s171
        %s173 = sand.u32 %s28, 1
        %s174 = smul.addr %s173, 128
        %s175 = scalar_lea.vmem [#allocation2], %s174
        %p176 = pneg %p41
        %p177 = pneg %p38
        %p178 = pneg %p62
        %p179 = pneg %p59
        %p180 = pneg %p83
        %p181 = pneg %p80
        %p182 = pneg %p109
        %p183 = pneg %p106
        %s184 = sand.u32 %s96, 1
        %s185 = scalar_lea.sflag [#allocation4], %s184
        %s186 = sand.u32 %s96, 1
        %s187 = smul.addr %s186, 128
        %s188 = scalar_lea.vmem [#allocation5], %s187
        %v189 = vld [vmem:[%s166] sm:$0xff]
        %v190 = vld [vmem:[%s166 + $0x10] sm:$0xff]
        %v191 = vld [vmem:[%s166 + $0x20] sm:$0xff]
        %v192 = vld [vmem:[%s166 + $0x30] sm:$0xff]
        %v193 = vld [vmem:[%s166 + $0x40] sm:$0xff]
        %v194 = vld [vmem:[%s166 + $0x50] sm:$0xff]
        %v195 = vld [vmem:[%s166 + $0x60] sm:$0xff]
        %v196 = vld [vmem:[%s166 + $0x70] sm:$0xff]
        %v197 = vadd.f32 %v189, 0.0
        %v198 = vadd.f32 %v190, 0.0
        %v199 = vadd.f32 %v191, 0.0
        %v200 = vadd.f32 %v192, 0.0
        %v201 = vadd.f32 %v193, 0.0
        %v202 = vadd.f32 %v194, 0.0
        %v203 = vadd.f32 %v195, 0.0
        %v204 = vadd.f32 %v196, 0.0
        %205 = vadd.xlane.f32.xlu0 %v197
        %v206 = vpop.xlane.xlu0 %205
        %207 = vadd.xlane.f32.xlu0 %v198
        %v208 = vpop.xlane.xlu0 %207
        %209 = vadd.xlane.f32.xlu0 %v199
        %v210 = vpop.xlane.xlu0 %209
        %211 = vadd.xlane.f32.xlu0 %v200
        %v212 = vpop.xlane.xlu0 %211
        %213 = vadd.xlane.f32.xlu0 %v201
        %v214 = vpop.xlane.xlu0 %213
        %215 = vadd.xlane.f32.xlu0 %v202
        %v216 = vpop.xlane.xlu0 %215
        %217 = vadd.xlane.f32.xlu0 %v203
        %v218 = vpop.xlane.xlu0 %217
        %219 = vadd.xlane.f32.xlu0 %v204
        %v220 = vpop.xlane.xlu0 %219
        %221 = vmax.xlane.f32.xlu0 %v189
        %v222 = vpop.xlane.xlu0 %221
        %223 = vmax.xlane.f32.xlu0 %v190
        %v224 = vpop.xlane.xlu0 %223
        %225 = vmax.xlane.f32.xlu0 %v191
        %v226 = vpop.xlane.xlu0 %225
        %227 = vmax.xlane.f32.xlu0 %v192
        %v228 = vpop.xlane.xlu0 %227
        %229 = vmax.xlane.f32.xlu0 %v193
        %v230 = vpop.xlane.xlu0 %229
        %231 = vmax.xlane.f32.xlu0 %v194
        %v232 = vpop.xlane.xlu0 %231
        %233 = vmax.xlane.f32.xlu0 %v195
        %v234 = vpop.xlane.xlu0 %233
        %235 = vmax.xlane.f32.xlu0 %v196
        %v236 = vpop.xlane.xlu0 %235
        %v237 = vld [vmem:[%s166 + $0x8] sm:$0xff]
        %v238 = vld [vmem:[%s166 + $0x18] sm:$0xff]
        %v239 = vld [vmem:[%s166 + $0x28] sm:$0xff]
        %v240 = vld [vmem:[%s166 + $0x38] sm:$0xff]
        %v241 = vld [vmem:[%s166 + $0x48] sm:$0xff]
        %v242 = vld [vmem:[%s166 + $0x58] sm:$0xff]
        %v243 = vld [vmem:[%s166 + $0x68] sm:$0xff]
        %v244 = vld [vmem:[%s166 + $0x78] sm:$0xff]
        %vm245 = vcmask 556032
        %v246 = vsel %vm245, %v237, 0.0
        %247 = vadd.xlane.f32.xlu0 %v246
        %v248 = vpop.xlane.xlu0 %247
        %v249 = vsel %vm245, %v238, 0.0
        %250 = vadd.xlane.f32.xlu0 %v249
        %v251 = vpop.xlane.xlu0 %250
        %v252 = vsel %vm245, %v239, 0.0
        %253 = vadd.xlane.f32.xlu0 %v252
        %v254 = vpop.xlane.xlu0 %253
        %v255 = vsel %vm245, %v240, 0.0
        %256 = vadd.xlane.f32.xlu0 %v255
        %v257 = vpop.xlane.xlu0 %256
        %v258 = vsel %vm245, %v241, 0.0
        %259 = vadd.xlane.f32.xlu0 %v258
        %v260 = vpop.xlane.xlu0 %259
        %v261 = vsel %vm245, %v242, 0.0
        %262 = vadd.xlane.f32.xlu0 %v261
        %v263 = vpop.xlane.xlu0 %262
        %v264 = vsel %vm245, %v243, 0.0
        %265 = vadd.xlane.f32.xlu0 %v264
        %v266 = vpop.xlane.xlu0 %265
        %v267 = vsel %vm245, %v244, 0.0
        %268 = vadd.xlane.f32.xlu0 %v267
        %v269 = vpop.xlane.xlu0 %268
        %v270 = vadd.f32 %v206, %v248
        %v271 = vadd.f32 %v208, %v251
        %v272 = vadd.f32 %v210, %v254
        %v273 = vadd.f32 %v212, %v257
        %v274 = vadd.f32 %v214, %v260
        %v275 = vadd.f32 %v216, %v263
        %v276 = vadd.f32 %v218, %v266
        %v277 = vadd.f32 %v220, %v269
        %v278 = vsel %vm245, %v237, -inf
        %279 = vmax.xlane.f32.xlu0 %v278
        %v280 = vpop.xlane.xlu0 %279
        %v281 = vsel %vm245, %v238, -inf
        %282 = vmax.xlane.f32.xlu0 %v281
        %v283 = vpop.xlane.xlu0 %282
        %v284 = vsel %vm245, %v239, -inf
        %285 = vmax.xlane.f32.xlu0 %v284
        %v286 = vpop.xlane.xlu0 %285
        %v287 = vsel %vm245, %v240, -inf
        %288 = vmax.xlane.f32.xlu0 %v287
        %v289 = vpop.xlane.xlu0 %288
        %v290 = vsel %vm245, %v241, -inf
        %291 = vmax.xlane.f32.xlu0 %v290
        %v292 = vpop.xlane.xlu0 %291
        %v293 = vsel %vm245, %v242, -inf
        %294 = vmax.xlane.f32.xlu0 %v293
        %v295 = vpop.xlane.xlu0 %294
        %v296 = vsel %vm245, %v243, -inf
        %297 = vmax.xlane.f32.xlu0 %v296
        %v298 = vpop.xlane.xlu0 %297
        %v299 = vsel %vm245, %v244, -inf
        %300 = vmax.xlane.f32.xlu0 %v299
        %v301 = vpop.xlane.xlu0 %300
        %v302 = vmax.f32 %v222, %v280
        %v303 = vmax.f32 %v224, %v283
        %v304 = vmax.f32 %v226, %v286
        %v305 = vmax.f32 %v228, %v289
        %v306 = vmax.f32 %v230, %v292
        %v307 = vmax.f32 %v232, %v295
        %v308 = vmax.f32 %v234, %v298
        %v309 = vmax.f32 %v236, %v301
        %v310 = vmul.f32 %v270, 0.0051020407
        %v311 = vmul.f32 %v271, 0.0051020407
        %v312 = vmul.f32 %v272, 0.0051020407
        %v313 = vmul.f32 %v273, 0.0051020407
        %v314 = vmul.f32 %v274, 0.0051020407
        %v315 = vmul.f32 %v275, 0.0051020407
        %v316 = vmul.f32 %v276, 0.0051020407
        %v317 = vmul.f32 %v277, 0.0051020407
        %vm318 = vcmask 7168
        %v319 = vsel %vm318, %v310, %v302
        %v320 = vsel %vm318, %v311, %v303
        %v321 = vsel %vm318, %v312, %v304
        %v322 = vsel %vm318, %v313, %v305
        %v323 = vsel %vm318, %v314, %v306
        %v324 = vsel %vm318, %v315, %v307
        %v325 = vsel %vm318, %v316, %v308
        %v326 = vsel %vm318, %v317, %v309
        %v327 = vld [vmem:[%s1] sm:$0xf]
        %vm328 = vcmask 523264
        %v330 = vsel %vm328, %v327, 0
        %332 = vmatprep.subr.mxu0 0.0
        %333 = vmatpush1.msra.mxu0 %v319
        %334 = vmatprep.subr.mxu0 0.0
        %335 = vmatpush1.msra.mxu0 %v320
        %336 = vmatprep.subr.mxu0 0.0
        %337 = vmatpush1.msra.mxu0 %v321
        %338 = vmatprep.subr.mxu0 0.0
        %339 = vmatpush1.msra.mxu0 %v322
        %340 = vmatprep.subr.mxu0 0.0
        %341 = vmatpush1.msra.mxu0 %v323
        %342 = vmatprep.subr.mxu0 0.0
        %343 = vmatpush1.msra.mxu0 %v324
        %344 = vmatprep.subr.mxu0 0.0
        %345 = vmatpush1.msra.mxu0 %v325
        %346 = vmatprep.subr.mxu0 0.0
        %347 = vmatpush1.msra.mxu0 %v326
        %348 = vmatprep.subr.mxu0 0.0
        %349 = vmatpush1.msra.mxu0 0.0
        %350 = vmatprep.subr.mxu0 0.0
        %351 = vmatpush1.msra.mxu0 0.0
        %352 = vmatprep.subr.mxu0 0.0
        %353 = vmatpush1.msra.mxu0 0.0
        %354 = vmatprep.subr.mxu0 0.0
        %355 = vmatpush1.msra.mxu0 0.0
        %356 = vmatprep.subr.mxu0 0.0
        %357 = vmatpush1.msra.mxu0 0.0
        %358 = vmatprep.subr.mxu0 0.0
        %359 = vmatpush1.msra.mxu0 0.0
        %360 = vmatprep.subr.mxu0 0.0
        %361 = vmatpush1.msra.mxu0 0.0
        %362 = vmatprep.subr.mxu0 0.0
        %363 = vmatpush1.msra.mxu0 0.0
        %364 = vmatprep.subr.mxu0 0.0
        %365 = vmatpush1.msra.mxu0 0.0
        %366 = vmatprep.subr.mxu0 0.0
        %367 = vmatpush1.msra.mxu0 0.0
        %368 = vmatprep.subr.mxu0 0.0
        %369 = vmatpush1.msra.mxu0 0.0
        %370 = vmatprep.subr.mxu0 0.0
        %371 = vmatpush1.msra.mxu0 0.0
        %372 = vmatprep.subr.mxu0 0.0
        %373 = vmatpush1.msra.mxu0 0.0
        %374 = vmatprep.subr.mxu0 0.0
        %375 = vmatpush1.msra.mxu0 0.0
        %376 = vmatprep.subr.mxu0 0.0
        %377 = vmatpush1.msra.mxu0 0.0
        %378 = vmatprep.subr.mxu0 0.0
        %379 = vmatpush1.msra.mxu0 0.0
        %380 = vmatprep.subr.mxu0 0.0
        %381 = vmatpush1.msra.mxu0 0.0
        %382 = vmatprep.subr.mxu0 0.0
        %383 = vmatpush1.msra.mxu0 0.0
        %384 = vmatprep.subr.mxu0 0.0
        %385 = vmatpush1.msra.mxu0 0.0
        %386 = vmatprep.subr.mxu0 0.0
        %387 = vmatpush1.msra.mxu0 0.0
        %388 = vmatprep.subr.mxu0 0.0
        %389 = vmatpush1.msra.mxu0 0.0
        %390 = vmatprep.subr.mxu0 0.0
        %391 = vmatpush1.msra.mxu0 0.0
        %392 = vmatprep.subr.mxu0 0.0
        %393 = vmatpush1.msra.mxu0 0.0
        %394 = vmatprep.subr.mxu0 0.0
        %395 = vmatpush1.msra.mxu0 0.0
        %396 = vmatprep.mubr.f32.mxu0 0.0
        %397 = vmatmul.mubr.f32.gmra.mrb[0].mxu0 %v330
        %v398 = vpop.f32.mrb[0].mxu0
        %v399 = vadd.f32 0.0, %v398
        %v400 = vpop.f32.mrb[0].mxu0
        %401 = vdwg.mxu0
        %v402 = vmax.f32 %v399, 0.0
        %v403 = vld [vmem:[%s2] sm:$0xff]
        %v404 = vld [vmem:[%s2 + $0x8] sm:$0xff]
        %v405 = vld [vmem:[%s2 + $0x10] sm:$0xff]
        %v406 = vld [vmem:[%s2 + $0x18] sm:$0xff]
        %v407 = vld [vmem:[%s2 + $0x20] sm:$0xff]
        %v408 = vld [vmem:[%s2 + $0x28] sm:$0xff]
        %v409 = vld [vmem:[%s2 + $0x30] sm:$0xff]
        %v410 = vld [vmem:[%s2 + $0x38] sm:$0xff]
        %vm411 = vcmask 31744
        %v413 = vsel %vm411, %v403, 0
        %v416 = vsel %vm411, %v404, 0
        %v419 = vsel %vm411, %v405, 0
        %v422 = vsel %vm411, %v406, 0
        %v425 = vsel %vm411, %v407, 0
        %v428 = vsel %vm411, %v408, 0
        %v431 = vsel %vm411, %v409, 0
        %v434 = vsel %vm411, %v410, 0
        %vm436 = vcmask 1043456
        %v438 = vsel %vm436, %v402, 0
        %440 = vmatprep.subr.mxu0 0.0
        %441 = vmatpush1.msra.mxu0 %v438
        %442 = vmatprep.subr.mxu0 0.0
        %443 = vmatpush1.msra.mxu0 0.0
        %444 = vmatprep.subr.mxu0 0.0
        %445 = vmatpush1.msra.mxu0 0.0
        %446 = vmatprep.subr.mxu0 0.0
        %447 = vmatpush1.msra.mxu0 0.0
        %448 = vmatprep.subr.mxu0 0.0
        %449 = vmatpush1.msra.mxu0 0.0
        %450 = vmatprep.subr.mxu0 0.0
        %451 = vmatpush1.msra.mxu0 0.0
        %452 = vmatprep.subr.mxu0 0.0
        %453 = vmatpush1.msra.mxu0 0.0
        %454 = vmatprep.subr.mxu0 0.0
        %455 = vmatpush1.msra.mxu0 0.0
        %456 = vmatprep.subr.mxu0 0.0
        %457 = vmatpush1.msra.mxu0 0.0
        %458 = vmatprep.subr.mxu0 0.0
        %459 = vmatpush1.msra.mxu0 0.0
        %460 = vmatprep.subr.mxu0 0.0
        %461 = vmatpush1.msra.mxu0 0.0
        %462 = vmatprep.subr.mxu0 0.0
        %463 = vmatpush1.msra.mxu0 0.0
        %464 = vmatprep.subr.mxu0 0.0
        %465 = vmatpush1.msra.mxu0 0.0
        %466 = vmatprep.subr.mxu0 0.0
        %467 = vmatpush1.msra.mxu0 0.0
        %468 = vmatprep.subr.mxu0 0.0
        %469 = vmatpush1.msra.mxu0 0.0
        %470 = vmatprep.subr.mxu0 0.0
        %471 = vmatpush1.msra.mxu0 0.0
        %472 = vmatprep.subr.mxu0 0.0
        %473 = vmatpush1.msra.mxu0 0.0
        %474 = vmatprep.subr.mxu0 0.0
        %475 = vmatpush1.msra.mxu0 0.0
        %476 = vmatprep.subr.mxu0 0.0
        %477 = vmatpush1.msra.mxu0 0.0
        %478 = vmatprep.subr.mxu0 0.0
        %479 = vmatpush1.msra.mxu0 0.0
        %480 = vmatprep.subr.mxu0 0.0
        %481 = vmatpush1.msra.mxu0 0.0
        %482 = vmatprep.subr.mxu0 0.0
        %483 = vmatpush1.msra.mxu0 0.0
        %484 = vmatprep.subr.mxu0 0.0
        %485 = vmatpush1.msra.mxu0 0.0
        %486 = vmatprep.subr.mxu0 0.0
        %487 = vmatpush1.msra.mxu0 0.0
        %488 = vmatprep.subr.mxu0 0.0
        %489 = vmatpush1.msra.mxu0 0.0
        %490 = vmatprep.subr.mxu0 0.0
        %491 = vmatpush1.msra.mxu0 0.0
        %492 = vmatprep.subr.mxu0 0.0
        %493 = vmatpush1.msra.mxu0 0.0
        %494 = vmatprep.subr.mxu0 0.0
        %495 = vmatpush1.msra.mxu0 0.0
        %496 = vmatprep.subr.mxu0 0.0
        %497 = vmatpush1.msra.mxu0 0.0
        %498 = vmatprep.subr.mxu0 0.0
        %499 = vmatpush1.msra.mxu0 0.0
        %500 = vmatprep.subr.mxu0 0.0
        %501 = vmatpush1.msra.mxu0 0.0
        %502 = vmatprep.subr.mxu0 0.0
        %503 = vmatpush1.msra.mxu0 0.0
        %504 = vmatprep.mubr.f32.mxu0 0.0
        %505 = vmatmul.mubr.f32.gmra.mrb[0].mxu0 %v413
        %v506 = vpop.f32.mrb[0].mxu0
        %v507 = vadd.f32 0.0, %v506
        %v508 = vpop.f32.mrb[0].mxu0
        %509 = vmatprep.mubr.f32.mxu0 0.0
        %510 = vmatmul.mubr.f32.gmra.mrb[0].mxu0 %v416
        %v511 = vpop.f32.mrb[0].mxu0
        %v512 = vadd.f32 0.0, %v511
        %v513 = vpop.f32.mrb[0].mxu0
        %514 = vmatprep.mubr.f32.mxu0 0.0
        %515 = vmatmul.mubr.f32.gmra.mrb[0].mxu0 %v419
        %v516 = vpop.f32.mrb[0].mxu0
        %v517 = vadd.f32 0.0, %v516
        %v518 = vpop.f32.mrb[0].mxu0
        %519 = vmatprep.mubr.f32.mxu0 0.0
        %520 = vmatmul.mubr.f32.gmra.mrb[0].mxu0 %v422
        %v521 = vpop.f32.mrb[0].mxu0
        %v522 = vadd.f32 0.0, %v521
        %v523 = vpop.f32.mrb[0].mxu0
        %524 = vmatprep.mubr.f32.mxu0 0.0
        %525 = vmatmul.mubr.f32.gmra.mrb[0].mxu0 %v425
        %v526 = vpop.f32.mrb[0].mxu0
        %v527 = vadd.f32 0.0, %v526
        %v528 = vpop.f32.mrb[0].mxu0
        %529 = vmatprep.mubr.f32.mxu0 0.0
        %530 = vmatmul.mubr.f32.gmra.mrb[0].mxu0 %v428
        %v531 = vpop.f32.mrb[0].mxu0
        %v532 = vadd.f32 0.0, %v531
        %v533 = vpop.f32.mrb[0].mxu0
        %534 = vmatprep.mubr.f32.mxu0 0.0
        %535 = vmatmul.mubr.f32.gmra.mrb[0].mxu0 %v431
        %v536 = vpop.f32.mrb[0].mxu0
        %v537 = vadd.f32 0.0, %v536
        %v538 = vpop.f32.mrb[0].mxu0
        %539 = vmatprep.mubr.f32.mxu0 0.0
        %540 = vmatmul.mubr.f32.gmra.mrb[0].mxu0 %v434
        %v541 = vpop.f32.mrb[0].mxu0
        %v542 = vadd.f32 0.0, %v541
        %v543 = vpop.f32.mrb[0].mxu0
        %544 = vdwg.mxu0
        %553 = vrot.lane.b32.xlu0 %v507, 127
        %v554 = vpop.permute.xlu0 %553
        %555 = vrot.lane.b32.xlu0 %v512, 127
        %v556 = vpop.permute.xlu0 %555
        %557 = vrot.lane.b32.xlu0 %v517, 127
        %v558 = vpop.permute.xlu0 %557
        %559 = vrot.lane.b32.xlu0 %v522, 127
        %v560 = vpop.permute.xlu0 %559
        %561 = vrot.lane.b32.xlu0 %v527, 127
        %v562 = vpop.permute.xlu0 %561
        %563 = vrot.lane.b32.xlu0 %v532, 127
        %v564 = vpop.permute.xlu0 %563
        %565 = vrot.lane.b32.xlu0 %v537, 127
        %v566 = vpop.permute.xlu0 %565
        %567 = vrot.lane.b32.xlu0 %v542, 127
        %v568 = vpop.permute.xlu0 %567
        %v577 = vadd.f32 %v507, %v554
        %v578 = vadd.f32 %v512, %v556
        %v579 = vadd.f32 %v517, %v558
        %v580 = vadd.f32 %v522, %v560
        %v581 = vadd.f32 %v527, %v562
        %v582 = vadd.f32 %v532, %v564
        %v583 = vadd.f32 %v537, %v566
        %v584 = vadd.f32 %v542, %v568
        %v585 = vxor.u32 %v577, 2147483648
        %v586 = vxor.u32 %v578, 2147483648
        %v587 = vxor.u32 %v579, 2147483648
        %v588 = vxor.u32 %v580, 2147483648
        %v589 = vxor.u32 %v581, 2147483648
        %v590 = vxor.u32 %v582, 2147483648
        %v591 = vxor.u32 %v583, 2147483648
        %v592 = vxor.u32 %v584, 2147483648
        %v593 = vmul.f32 %v585, 1.442695
        %v594 = vpow.pop %v593
        %v595 = vmul.f32 %v586, 1.442695
        %v596 = vpow.pop %v595
        %v597 = vmul.f32 %v587, 1.442695
        %v598 = vpow.pop %v597
        %v599 = vmul.f32 %v588, 1.442695
        %v600 = vpow.pop %v599
        %v601 = vmul.f32 %v589, 1.442695
        %v602 = vpow.pop %v601
        %v603 = vmul.f32 %v590, 1.442695
        %v604 = vpow.pop %v603
        %v605 = vmul.f32 %v591, 1.442695
        %v606 = vpow.pop %v605
        %v607 = vmul.f32 %v592, 1.442695
        %v608 = vpow.pop %v607
        %v609 = vadd.f32 %v594, 1.0
        %v610 = vadd.f32 %v596, 1.0
        %v611 = vadd.f32 %v598, 1.0
        %v612 = vadd.f32 %v600, 1.0
        %v613 = vadd.f32 %v602, 1.0
        %v614 = vadd.f32 %v604, 1.0
        %v615 = vadd.f32 %v606, 1.0
        %v616 = vadd.f32 %v608, 1.0
        %v617 = vrcp.pop %v609
        %v618 = vmul.f32 1.0, %v617
        %v619 = vrcp.pop %v610
        %v620 = vmul.f32 1.0, %v619
        %v621 = vrcp.pop %v611
        %v622 = vmul.f32 1.0, %v621
        %v623 = vrcp.pop %v612
        %v624 = vmul.f32 1.0, %v623
        %v625 = vrcp.pop %v613
        %v626 = vmul.f32 1.0, %v625
        %v627 = vrcp.pop %v614
        %v628 = vmul.f32 1.0, %v627
        %v629 = vrcp.pop %v615
        %v630 = vmul.f32 1.0, %v629
        %v631 = vrcp.pop %v616
        %v632 = vmul.f32 1.0, %v631
        %634 = vset.pattern.permute.xlu0 0
        %635 = vperm.xlu0 %634, %v618
        %v636 = vpop.permute.xlu0 %635
        %639 = vset.pattern.permute.xlu0 0
        %640 = vperm.xlu0 %639, %v620
        %v641 = vpop.permute.xlu0 %640
        %644 = vset.pattern.permute.xlu0 0
        %645 = vperm.xlu0 %644, %v622
        %v646 = vpop.permute.xlu0 %645
        %649 = vset.pattern.permute.xlu0 0
        %650 = vperm.xlu0 %649, %v624
        %v651 = vpop.permute.xlu0 %650
        %654 = vset.pattern.permute.xlu0 0
        %655 = vperm.xlu0 %654, %v626
        %v656 = vpop.permute.xlu0 %655
        %659 = vset.pattern.permute.xlu0 0
        %660 = vperm.xlu0 %659, %v628
        %v661 = vpop.permute.xlu0 %660
        %664 = vset.pattern.permute.xlu0 0
        %665 = vperm.xlu0 %664, %v630
        %v666 = vpop.permute.xlu0 %665
        %669 = vset.pattern.permute.xlu0 0
        %670 = vperm.xlu0 %669, %v632
        %v671 = vpop.permute.xlu0 %670
        %v673 = vmul.f32 %v189, %v636
        %v674 = vmul.f32 %v190, %v641
        %v675 = vmul.f32 %v191, %v646
        %v676 = vmul.f32 %v192, %v651
        %v677 = vmul.f32 %v193, %v656
        %v678 = vmul.f32 %v194, %v661
        %v679 = vmul.f32 %v195, %v666
        %v680 = vmul.f32 %v196, %v671
        %681 = vst [vmem:[%s188] sm:$0xff] %v673
        %682 = vst [vmem:[%s188 + $0x10] sm:$0xff] %v674
        %683 = vst [vmem:[%s188 + $0x20] sm:$0xff] %v675
        %684 = vst [vmem:[%s188 + $0x30] sm:$0xff] %v676
        %685 = vst [vmem:[%s188 + $0x40] sm:$0xff] %v677
        %686 = vst [vmem:[%s188 + $0x50] sm:$0xff] %v678
        %687 = vst [vmem:[%s188 + $0x60] sm:$0xff] %v679
        %688 = vst [vmem:[%s188 + $0x70] sm:$0xff] %v680
        %v689 = vld [vmem:[%s166 + $0x8] sm:$0xff]
        %v690 = vld [vmem:[%s166 + $0x18] sm:$0xff]
        %v691 = vld [vmem:[%s166 + $0x28] sm:$0xff]
        %v692 = vld [vmem:[%s166 + $0x38] sm:$0xff]
        %v693 = vld [vmem:[%s166 + $0x48] sm:$0xff]
        %v694 = vld [vmem:[%s166 + $0x58] sm:$0xff]
        %v695 = vld [vmem:[%s166 + $0x68] sm:$0xff]
        %v696 = vld [vmem:[%s166 + $0x78] sm:$0xff]
        %v697 = vmul.f32 %v689, %v636
        %v698 = vmul.f32 %v690, %v641
        %v699 = vmul.f32 %v691, %v646
        %v700 = vmul.f32 %v692, %v651
        %v701 = vmul.f32 %v693, %v656
        %v702 = vmul.f32 %v694, %v661
        %v703 = vmul.f32 %v695, %v666
        %v704 = vmul.f32 %v696, %v671
        %705 = vst.msk [vmem:[%s188 + $0x8] sm:$0xff] %vm245, %v697
        %706 = vst.msk [vmem:[%s188 + $0x18] sm:$0xff] %vm245, %v698
        %707 = vst.msk [vmem:[%s188 + $0x28] sm:$0xff] %vm245, %v699
        %708 = vst.msk [vmem:[%s188 + $0x38] sm:$0xff] %vm245, %v700
        %709 = vst.msk [vmem:[%s188 + $0x48] sm:$0xff] %vm245, %v701
        %710 = vst.msk [vmem:[%s188 + $0x58] sm:$0xff] %vm245, %v702
        %711 = vst.msk [vmem:[%s188 + $0x68] sm:$0xff] %vm245, %v703
        %712 = vst.msk [vmem:[%s188 + $0x78] sm:$0xff] %vm245, %v704
        %s713 = sand.u32 %s96, 1
        %s714 = scalar_lea.sflag [#allocation4], %s713
        %s715 = sand.u32 %s96, 1
        %s716 = smul.addr %s715, 128
        %s717 = scalar_lea.vmem [#allocation5], %s716
        // Predicated region
        $region37: #{tpu_custom_call.1} parent=31 // pred_check
          %p718 = pneg %p106
        $region38: #{tpu_custom_call.1} parent=31 // pred_check_branch
          %720 = sbr.rel (%p718) target = $region40
        $region39: #{tpu_custom_call.1} parent=31 // pred_region
          %s722 = ssub.s32 2048, 2048
          %723 = vsyncadd %s714, %s722
          %s724 = smul.addr %s20, 16
          %s725 = smul.addr %s724, 128
          %s726 = scalar_lea.hbm %s3, %s725
          %s727 = sshll.u32 %s717, 4
          %s728 = int_to_ptr.vmem [resolvable:$true] %s727
          %733 = dma.vmem_to_hbm [thread:$0]  %s728, 2048, %s726, %s714, 256, 256, 16
        $region40: #{tpu_custom_call.1} parent=31 // pred_fallthru
          _
      $region32: #{tpu_custom_call.1} parent=5 // pred_fallthru
        _
      %p734 = scmp.le.s32.totalorder 2, %s15
      // Predicated region
      $region41: #{tpu_custom_call.1} parent=5 // pred_check
        %p735 = pneg %p734
      $region42: #{tpu_custom_call.1} parent=5 // pred_check_branch
        %737 = sbr.rel (%p735) target = $region44
      $region43: #{tpu_custom_call.1} parent=5 // pred_region
        %s738 = ssub.s32 %s15, 2
        // Predicated region
        $region45: #{tpu_custom_call.1} parent=43 // pred_check
          %p739 = pneg %p112
        $region46: #{tpu_custom_call.1} parent=43 // pred_check_branch
          %741 = sbr.rel (%p739) target = $region48
        $region47: #{tpu_custom_call.1} parent=43 // pred_region
          %s742 = sand.u32 %s97, 1
          %s743 = scalar_lea.sflag [#allocation4], %s742
          %s744 = sand.u32 %s97, 1
          %s745 = smul.addr %s744, 128
          %s746 = scalar_lea.vmem [#allocation5], %s745
          %747 = dma.done %s743, 2048
        $region48: #{tpu_custom_call.1} parent=43 // pred_fallthru
          _
      $region44: #{tpu_custom_call.1} parent=5 // pred_fallthru
        _
    $region6: #{tpu_custom_call.1} parent=1 // loop_footer
      %s19 = sadd.s32 1, %s15
    $region7: #{tpu_custom_call.1} parent=1 // loop_footer_branch
      %14 = sbr.rel target = $region3
    $region8: #{tpu_custom_call.1} parent=1 // loop_exit
      _
    %748 = vsyncpa [#allocation3], 1
    %s749 = scalar_lea.sflag [#allocation3], 1
    %750 = vsyncpa %s749, 1
    %751 = vsyncpa [#allocation4], 1
    %s752 = scalar_lea.sflag [#allocation4], 1
    %753 = vsyncpa %s752, 1

</llo_original>
